<compile_context>
chip_gen: v7x
topology: tpu7x:2x2x1
jax: 0.10.0
libtpu: 0.0.40
codegen_flags: <defaults>
</compile_context>

<pallas_src>
import functools

import jax
import jax.numpy as jnp
from jax.experimental import pallas as pl
from jax.experimental.pallas import tpu as pltpu


def _vmem_budgets():
    """Generation-aware scoped-VMEM limit and x-buffer budget (bytes)."""
    try:
        cap = pltpu.get_tpu_info().vmem_capacity_bytes
    except Exception:                       # non-TPU backend / query unavailable
        cap = 64 * 1024 * 1024              # conservative: v7x per-TC VMEM
    vmem_limit = (cap * 3) // 4             # ~96 MiB on v5e/v6e, ~48 MiB on v7x
    x_budget = vmem_limit - (2 << 20)       # headroom for weights/gate/scratch
    return vmem_limit, x_budget


def _mlp_gate(w1, w2, pooled):
    """Shared MLP on a fused (avg | max) column block, then sigmoid.

    pooled: [C, 2] f32 (col 0 = avg, col 1 = max); w1: [Cr, C]; w2: [C, Cr].
    One w1 matmul + one w2 matmul instead of two of each.
    """
    hidden = jnp.maximum(
        jnp.dot(w1, pooled, preferred_element_type=jnp.float32), 0.0)   # [Cr,2]
    out = jnp.dot(w2, hidden, preferred_element_type=jnp.float32)       # [C, 2]
    return jax.nn.sigmoid(out[:, 0:1] + out[:, 1:2])                    # [C, 1]


# ---------------------------------------------------------------------------
# Fused single-pass kernel: pool + MLP + scale while x is resident in VMEM.
# ---------------------------------------------------------------------------
def _fused_kernel(x_ref, w1_ref, w2_ref, o_ref, *, inv_hw):
    x = x_ref[0]                                                       # [C, HW]
    avg = jnp.sum(x, axis=1, keepdims=True, dtype=jnp.float32) * inv_hw
    mx = jnp.max(x, axis=1, keepdims=True).astype(jnp.float32)
    pooled = jnp.concatenate([avg, mx], axis=1)                        # [C, 2]
    gate = _mlp_gate(w1_ref[...], w2_ref[...], pooled)                 # [C, 1]
    # Broadcast multiply in x's dtype (bf16 stays bf16: half the vreg and
    # load/store traffic vs a mixed f32*bf16 intermediate).
    o_ref[0] = (x * gate.astype(x.dtype)).astype(o_ref.dtype)


# ---------------------------------------------------------------------------
# Two-pass path, pass 1: per-image gate, HW tiles accumulated in VMEM scratch.
# ---------------------------------------------------------------------------
def _gate_kernel(x_ref, w1_ref, w2_ref, g_ref, sum_sc, max_sc, *,
                 inv_hw, hw, hw_tile, mask_last):
    j = pl.program_id(1)
    nj = pl.num_programs(1)

    @pl.when(j == 0)
    def _init():
        sum_sc[...] = jnp.zeros_like(sum_sc)
        max_sc[...] = jnp.full_like(max_sc, -jnp.inf)

    x = x_ref[0]                                                  # [C, hw_tile]

    def _accum_full():
        sum_sc[...] += jnp.sum(x, axis=1, keepdims=True, dtype=jnp.float32)
        max_sc[...] = jnp.maximum(
            max_sc[...], jnp.max(x, axis=1, keepdims=True).astype(jnp.float32))

    if mask_last:
        # Partial final tile: lanes beyond HW hold padding -> mask them out
        # (zero for the sum, -inf for the max).  Only the last grid step pays
        # the masking VALU cost.
        def _accum_masked():
            lane = jax.lax.broadcasted_iota(jnp.int32, x.shape, 1)
            valid = (j * hw_tile + lane) < hw
            xf = x.astype(jnp.float32)
            sum_sc[...] += jnp.sum(jnp.where(valid, xf, 0.0),
                                   axis=1, keepdims=True)
            max_sc[...] = jnp.maximum(
                max_sc[...],
                jnp.max(jnp.where(valid, xf, -jnp.inf), axis=1, keepdims=True))

        pl.when(j == nj - 1)(_accum_masked)
        pl.when(j != nj - 1)(_accum_full)
    else:
        _accum_full()

    @pl.when(j == nj - 1)
    def _finalize():
        pooled = jnp.concatenate([sum_sc[...] * inv_hw, max_sc[...]], axis=1)
        g_ref[0] = _mlp_gate(w1_ref[...], w2_ref[...], pooled).astype(g_ref.dtype)


# ---------------------------------------------------------------------------
# Two-pass path, pass 2: broadcast-scale (both grid axes parallel).
# ---------------------------------------------------------------------------
def _scale_kernel(x_ref, g_ref, o_ref):
    x = x_ref[...]
    o_ref[...] = (x * g_ref[...].astype(x.dtype)).astype(o_ref.dtype)


def _pick_hw_tile(hw, c, itemsize, budget, bufs):
    """Largest multiple-of-128 lane tile whose `bufs` [C, tile] x-buffers fit."""
    per_lane = max(1, bufs * c * itemsize)
    max_lanes = budget // per_lane
    if max_lanes >= hw:
        return hw                       # whole HW row fits; single tile
    t = int(max_lanes // 128) * 128
    return max(t, 128)                  # never below one full-lane vreg


def channel_attention(x_nchw, w1, w2, *, force_two_pass=False, hw_tile=None):
    """CBAM ChannelAttention forward.

    x_nchw: [N, C, H, W]; w1: [C//r, C]; w2: [C, C//r]. Returns NCHW.
    """
    n, c, h, w = x_nchw.shape
    cr = w1.shape[0]
    hw = h * w
    itemsize = jnp.dtype(x_nchw.dtype).itemsize

    vmem_limit, x_budget = _vmem_budgets()

    # Free reshape (row-major fold of H, W) — no data movement, no transposes.
    x = x_nchw.reshape(n, c, hw)

    mlp_flops = n * 8 * c * cr           # two matmuls, 2 columns, per image
    full_cost = pl.CostEstimate(
        flops=2 * n * c * hw + mlp_flops,          # pool reduce + gate multiply
        transcendentals=n * c,
        bytes_accessed=2 * n * c * hw * itemsize + 2 * c * cr * 4,
    )

    fused_bytes = 4 * c * hw * itemsize            # in + out, double-buffered
    use_fused = (not force_two_pass) and fused_bytes <= x_budget

    if use_fused:
        out = pl.pallas_call(
            functools.partial(_fused_kernel, inv_hw=1.0 / hw),
            out_shape=jax.ShapeDtypeStruct((n, c, hw), x.dtype),
            grid_spec=pltpu.PrefetchScalarGridSpec(
                num_scalar_prefetch=0,
                grid=(n,),
                in_specs=[
                    pl.BlockSpec((1, c, hw), lambda i: (i, 0, 0)),
                    pl.BlockSpec((cr, c), lambda i: (0, 0)),
                    pl.BlockSpec((c, cr), lambda i: (0, 0)),
                ],
                out_specs=pl.BlockSpec((1, c, hw), lambda i: (i, 0, 0)),
            ),
            compiler_params=pltpu.CompilerParams(
                dimension_semantics=("parallel",),
                vmem_limit_bytes=vmem_limit,
            ),
            cost_estimate=full_cost,
        )(x, w1, w2)
        return out.reshape(n, c, h, w)

    # ---------------- tiled two-pass path ----------------
    if hw_tile is not None:
        gate_tile = scale_tile = hw_tile
    else:
        # Pass 1 only double-buffers the input (gate output/weights are tiny),
        # so it can afford a ~2x larger lane tile than pass 2 (in + out).
        gate_tile = _pick_hw_tile(hw, c, itemsize, x_budget, bufs=2)
        scale_tile = _pick_hw_tile(hw, c, itemsize, x_budget, bufs=4)

    gate_tiles = pl.cdiv(hw, gate_tile)
    scale_tiles = pl.cdiv(hw, scale_tile)
    gate_mask_last = (hw % gate_tile) != 0

    gate_cost = pl.CostEstimate(
        flops=n * c * hw + mlp_flops,
        transcendentals=n * c,
        bytes_accessed=n * c * hw * itemsize + 2 * c * cr * 4 + n * c * 4,
    )
    scale_cost = pl.CostEstimate(
        flops=n * c * hw,
        transcendentals=0,
        bytes_accessed=2 * n * c * hw * itemsize + n * c * 4,
    )

    # Pass 1: gate [N, C, 1] (f32).  Weights stay resident (constant index map).
    gate = pl.pallas_call(
        functools.partial(_gate_kernel, inv_hw=1.0 / hw, hw=hw,
                          hw_tile=gate_tile, mask_last=gate_mask_last),
        out_shape=jax.ShapeDtypeStruct((n, c, 1), jnp.float32),
        grid_spec=pltpu.PrefetchScalarGridSpec(
            num_scalar_prefetch=0,
            grid=(n, gate_tiles),
            in_specs=[
                pl.BlockSpec((1, c, gate_tile), lambda i, j: (i, 0, j)),
                pl.BlockSpec((cr, c), lambda i, j: (0, 0)),
                pl.BlockSpec((c, cr), lambda i, j: (0, 0)),
            ],
            out_specs=pl.BlockSpec((1, c, 1), lambda i, j: (i, 0, 0)),
            scratch_shapes=[
                pltpu.VMEM((c, 1), jnp.float32),   # running sum
                pltpu.VMEM((c, 1), jnp.float32),   # running max
            ],
        ),
        compiler_params=pltpu.CompilerParams(
            dimension_semantics=("parallel", "arbitrary"),
            vmem_limit_bytes=vmem_limit,
        ),
        cost_estimate=gate_cost,
    )(x, w1, w2)

    # Pass 2: x * gate, fully parallel grid.  Out-of-range lanes of a partial
    # last tile are masked by the hardware store, so no in-kernel mask needed.
    out = pl.pallas_call(
        _scale_kernel,
        out_shape=jax.ShapeDtypeStruct((n, c, hw), x.dtype),
        grid_spec=pltpu.PrefetchScalarGridSpec(
            num_scalar_prefetch=0,
            grid=(n, scale_tiles),
            in_specs=[
                pl.BlockSpec((1, c, scale_tile), lambda i, j: (i, 0, j)),
                pl.BlockSpec((1, c, 1), lambda i, j: (i, 0, 0)),
            ],
            out_specs=pl.BlockSpec((1, c, scale_tile), lambda i, j: (i, 0, j)),
        ),
        compiler_params=pltpu.CompilerParams(
            dimension_semantics=("parallel", "parallel"),
            vmem_limit_bytes=vmem_limit,
        ),
        cost_estimate=scale_cost,
    )(x, gate)
    return out.reshape(n, c, h, w)


def channel_attention_ref(x_nchw, w1, w2):
    """Pure-JAX reference mirroring the PyTorch forward."""
    avg = jnp.mean(x_nchw, axis=(2, 3))          # [N, C]
    mx = jnp.max(x_nchw, axis=(2, 3))            # [N, C]

    def mlp(v):
        h = jnp.maximum(v @ w1.T, 0.0)           # [N, C//r]
        return h @ w2.T                          # [N, C]

    gate = jax.nn.sigmoid(mlp(avg) + mlp(mx))    # [N, C]
    return x_nchw * gate[:, :, None, None]


if __name__ == "__main__":
    N, C, H, W = 2, 8, 16, 16
    ratio = 4
    Cr = C // ratio

    key = jax.random.PRNGKey(0)
    kx, k1, k2, kx2 = jax.random.split(key, 4)

    x = jax.random.normal(kx, (N, C, H, W), dtype=jnp.float32)
    # Conv2d 1x1 weights (no bias), deterministic init.
    w1 = jax.random.uniform(k1, (Cr, C), jnp.float32, -1.0, 1.0) / jnp.sqrt(C)
    w2 = jax.random.uniform(k2, (C, Cr), jnp.float32, -1.0, 1.0) / jnp.sqrt(Cr)

    ref = channel_attention_ref(x, w1, w2)

    # Fused single-pass path (small feature map, whole image resident in VMEM).
    out_fused = jax.block_until_ready(channel_attention(x, w1, w2))
    assert out_fused.shape == (N, C, H, W)
    assert jnp.allclose(out_fused, ref, atol=1e-5, rtol=1e-5)

    # Tiled two-pass path (HW divisible by the tile).
    out_tiled = jax.block_until_ready(
        channel_attention(x, w1, w2, force_two_pass=True, hw_tile=128))
    assert out_tiled.shape == (N, C, H, W)
    assert jnp.allclose(out_tiled, ref, atol=1e-5, rtol=1e-5)

    # Tiled two-pass path with a masked partial last tile (HW = 17*17 = 289).
    H2, W2 = 17, 17
    x2 = jax.random.normal(kx2, (N, C, H2, W2), dtype=jnp.float32)
    ref2 = channel_attention_ref(x2, w1, w2)
    out_masked = jax.block_until_ready(
        channel_attention(x2, w1, w2, force_two_pass=True, hw_tile=128))
    assert out_masked.shape == (N, C, H2, W2)
    assert jnp.allclose(out_masked, ref2, atol=1e-5, rtol=1e-5)

    print("KERNEL_OK")
</pallas_src>

<mosaic_0001>
module attributes {stable_mosaic.version = 11 : i64} {
  func.func @_fused_kernel(%arg0: i32, %arg1: memref<1x8x256xf32, #tpu.memory_space<vmem>>, %arg2: memref<2x8xf32, #tpu.memory_space<vmem>>, %arg3: memref<8x2xf32, #tpu.memory_space<vmem>>, %arg4: memref<1x8x256xf32, #tpu.memory_space<vmem>>) attributes {dimension_semantics = [#tpu.dimension_semantics<parallel>], iteration_bounds = array<i64: 2>, scalar_prefetch = 0 : i64, scratch_operands = 0 : i64, tpu.core_type = #tpu.core_type<tc>, window_params = [{transform_indices = @transform_0, window_bounds = array<i64: 1, 8, 256>}, {pipeline_mode = #tpu.pipeline_mode<synchronous>, transform_indices = @transform_1, window_bounds = array<i64: 2, 8>}, {pipeline_mode = #tpu.pipeline_mode<synchronous>, transform_indices = @transform_2, window_bounds = array<i64: 8, 2>}, {transform_indices = @transform_3, window_bounds = array<i64: 1, 8, 256>}]} {
    %c0 = arith.constant 0 : index
    %c0_0 = arith.constant 0 : index
    %c0_1 = arith.constant 0 : index
    %0 = vector.load %arg1[%c0, %c0_0, %c0_1] : memref<1x8x256xf32, #tpu.memory_space<vmem>>, vector<1x8x256xf32>
    %1 = vector.shape_cast %0 : vector<1x8x256xf32> to vector<8x256xf32>
    %cst = arith.constant dense<0.000000e+00> : vector<8xf32>
    %2 = vector.multi_reduction <add>, %1, %cst [1] : vector<8x256xf32> to vector<8xf32>
    %3 = vector.shape_cast %2 : vector<8xf32> to vector<8x1xf32>
    %cst_2 = arith.constant 3.906250e-03 : f32
    %4 = vector.broadcast %cst_2 : f32 to vector<8x1xf32>
    %5 = arith.mulf %3, %4 : vector<8x1xf32>
    %cst_3 = arith.constant dense<0xFF800000> : vector<8xf32>
    %6 = vector.multi_reduction <maximumf>, %1, %cst_3 [1] : vector<8x256xf32> to vector<8xf32>
    %7 = vector.shape_cast %6 : vector<8xf32> to vector<8x1xf32>
    %8 = tpu.concatenate %5, %7 in 1 : vector<8x1xf32>, vector<8x1xf32> -> vector<8x2xf32>
    %c0_4 = arith.constant 0 : index
    %c0_5 = arith.constant 0 : index
    %9 = vector.load %arg2[%c0_4, %c0_5] : memref<2x8xf32, #tpu.memory_space<vmem>>, vector<2x8xf32>
    %c0_6 = arith.constant 0 : index
    %c0_7 = arith.constant 0 : index
    %10 = vector.load %arg3[%c0_6, %c0_7] : memref<8x2xf32, #tpu.memory_space<vmem>>, vector<8x2xf32>
    %cst_8 = arith.constant dense<0.000000e+00> : vector<2x2xf32>
    %11 = tpu.matmul %9, %8, %cst_8 {dimension_numbers = #tpu.dot_dimension_numbers<[1], [0], [0], [1], [0, 0, 1, 1], [], []>} : vector<2x8xf32>, vector<8x2xf32>, vector<2x2xf32> -> vector<2x2xf32>
    %cst_9 = arith.constant 0.000000e+00 : f32
    %12 = vector.broadcast %cst_9 : f32 to vector<2x2xf32>
    %13 = arith.maximumf %11, %12 : vector<2x2xf32>
    %cst_10 = arith.constant dense<0.000000e+00> : vector<8x2xf32>
    %14 = tpu.matmul %10, %13, %cst_10 {dimension_numbers = #tpu.dot_dimension_numbers<[1], [0], [0], [1], [0, 0, 1, 1], [], []>} : vector<8x2xf32>, vector<2x2xf32>, vector<8x2xf32> -> vector<8x2xf32>
    %15 = vector.extract_strided_slice %14 {offsets = [0, 0], sizes = [8, 1], strides = [1, 1]} : vector<8x2xf32> to vector<8x1xf32>
    %16 = vector.extract_strided_slice %14 {offsets = [0, 1], sizes = [8, 1], strides = [1, 1]} : vector<8x2xf32> to vector<8x1xf32>
    %17 = arith.addf %15, %16 : vector<8x1xf32>
    %18 = arith.negf %17 : vector<8x1xf32>
    %19 = math.exp %18 : vector<8x1xf32>
    %cst_11 = arith.constant 1.000000e+00 : f32
    %20 = vector.broadcast %cst_11 : f32 to vector<8x1xf32>
    %21 = arith.addf %20, %19 : vector<8x1xf32>
    %22 = arith.divf %20, %21 : vector<8x1xf32>
    %23 = vector.broadcast %22 : vector<8x1xf32> to vector<8x256xf32>
    %24 = arith.mulf %1, %23 : vector<8x256xf32>
    %c0_12 = arith.constant 0 : index
    %c0_13 = arith.constant 0 : index
    %c0_14 = arith.constant 0 : index
    %25 = vector.load %arg4[%c0_12, %c0_13, %c0_14] : memref<1x8x256xf32, #tpu.memory_space<vmem>>, vector<1x8x256xf32>
    %26 = vector.shape_cast %25 : vector<1x8x256xf32> to vector<8x256xf32>
    %27 = vector.shape_cast %24 : vector<8x256xf32> to vector<1x8x256xf32>
    tpu.vector_store %arg4[%c0_12, %c0_13, %c0_14], %27 {strides = array<i32>} : memref<1x8x256xf32, #tpu.memory_space<vmem>>, vector<1x8x256xf32>,
    return
  }
  func.func @transform_0(%arg0: i32) -> (i32, i32, i32) {
    %c0_i32 = arith.constant 0 : i32
    %c0_i32_0 = arith.constant 0 : i32
    %c0_i32_1 = arith.constant 0 : i32
    return %arg0, %c0_i32, %c0_i32_0 : i32, i32, i32
  }
  func.func @transform_1(%arg0: i32) -> (i32, i32) {
    %c0_i32 = arith.constant 0 : i32
    %c0_i32_0 = arith.constant 0 : i32
    %c0_i32_1 = arith.constant 0 : i32
    return %c0_i32, %c0_i32_0 : i32, i32
  }
  func.func @transform_2(%arg0: i32) -> (i32, i32) {
    %c0_i32 = arith.constant 0 : i32
    %c0_i32_0 = arith.constant 0 : i32
    %c0_i32_1 = arith.constant 0 : i32
    return %c0_i32, %c0_i32_0 : i32, i32
  }
  func.func @transform_3(%arg0: i32) -> (i32, i32, i32) {
    %c0_i32 = arith.constant 0 : i32
    %c0_i32_0 = arith.constant 0 : i32
    %c0_i32_1 = arith.constant 0 : i32
    return %arg0, %c0_i32, %c0_i32_0 : i32, i32, i32
  }
}

</mosaic_0001>

<llo_original>
// kernel: tpu_custom_call.1
$region0: #{tpu_custom_call.1}
  #allocation0 [shape = 'u32[]', space=smem, size = 0x4, offset = 0x4, fixed_abs, tag = 'smem constant byte address 0x4 - core index']
  #allocation1 [shape = 'u32[144,128]{1,0:T(1,128)}', space=vmem, size = 0x12000, scoped, tag = 'internal scratch']
  %s0 = inlined_call_operand.hbm [shape: f32[2,8,256], index: 0, kind: input, shape index: {}]
  %s1 = inlined_call_operand.vmem [shape: f32[2,8], index: 1, kind: input, shape index: {}]
  %s2 = inlined_call_operand.vmem [shape: f32[8,2], index: 2, kind: input, shape index: {}]
  %s3 = inlined_call_operand.hbm [shape: f32[2,8,256], index: 3, kind: output, shape index: {}]
  %s4 = sld [smem:[#allocation0]]
  $region49: #{tpu_custom_call.1} parent=0
    _
  %s6 = ssub.s32 1, %s4
  %s7 = scalar_select 0, %s6, %s4
  $region1: #{tpu_custom_call.1} parent=0
    #allocation2 [shape = 'u8[16384]{0}', space=vmem, size = 0x4000, scoped, tag = 'input window, operand 0']
    #allocation3 [shape = 's32[2]{0}', space=sflag, size = 0x8, scoped, tag = 'scoped memory for tpu_custom_call.1']
    #allocation4 [shape = 's32[2]{0}', space=sflag, size = 0x8, scoped, tag = 'scoped memory for tpu_custom_call.1']
    #allocation5 [shape = 'u8[16384]{0}', space=vmem, size = 0x4000, scoped, tag = 'output window, operand 0']
    %8 = vsyncpa [#allocation3], 0
    %s9 = scalar_lea.sflag [#allocation3], 1
    %10 = vsyncpa %s9, 0
    %11 = vsyncpa [#allocation4], 0
    %s12 = scalar_lea.sflag [#allocation4], 1
    %13 = vsyncpa %s12, 0
    loop: start=0, step=1, limit=4
    $region2: #{tpu_custom_call.1} parent=1 // loop_pre_header
      _
    $region3: #{tpu_custom_call.1} parent=1 // loop_header
      %s15 = sphi 0, %s19
      %p16 = scmp.ge.s32.totalorder %s15, 4
      %s25 = sphi 0, %s27
      %s28 = sphi 0, %s25
      %s29 = sphi 0, %s28
      %s45 = sphi 0, %s29
      %s49 = sphi 0, %s49
      %s51 = sphi 0, %s49
      %s52 = sphi 0, %s51
      %s66 = sphi 0, %s52
      %s70 = sphi 0, %s70
      %s72 = sphi 0, %s70
      %s73 = sphi 0, %s72
      %s87 = sphi 0, %s73
      %s93 = sphi 0, %s95
      %s96 = sphi 0, %s93
      %s97 = sphi 0, %s96
      %s113 = sphi 0, %s97
    $region4: #{tpu_custom_call.1} parent=1 // loop_header_branch
      %18 = sbr.rel (%p16) target = $region8
    $region5: #{tpu_custom_call.1} parent=1 // loop_body
      %s20 = ssub.s32 %s15, 1
      %s21 = ssub.s32 %s15, 2
      %s22 = sadd.s32 %s15, 1
      %s23 = ssub.s32 %s15, %s22
      %p24 = scmp.eq.s32.totalorder %s23, 0
      %s26 = sadd.s32 %s25, 1
      %s27 = scalar_select %p24, %s25, %s26
      %p30 = pneg %p24
      %p31 = scmp.eq.s32.totalorder %s15, 1
      %p32 = por %p30, %p31
      %p33 = scmp.ne.s32.totalorder %s25, %s28
      %p34 = scmp.eq.s32.totalorder %s15, 0
      %p35 = por %p33, %p34
      %p36 = scmp.ne.s32.totalorder %s25, %s28
      %p37 = scmp.eq.s32.totalorder %s20, 1
      %p38 = por %p36, %p37
      %p39 = scmp.ne.s32.totalorder %s28, %s29
      %p40 = scmp.eq.s32.totalorder %s20, 0
      %p41 = por %p39, %p40
      %p42 = scmp.ne.s32.totalorder %s28, %s29
      %p43 = scmp.eq.s32.totalorder %s21, 1
      %p44 = por %p42, %p43
      %p46 = scmp.ne.s32.totalorder %s29, %s45
      %p47 = scmp.eq.s32.totalorder %s21, 0
      %p48 = por %p46, %p47
      %s50 = sadd.s32 %s49, 1
      %p53 = scmp.eq.s32.totalorder %s15, 1
      %p54 = scmp.ne.s32.totalorder %s49, %s51
      %p55 = scmp.eq.s32.totalorder %s15, 0
      %p56 = por %p54, %p55
      %p57 = scmp.ne.s32.totalorder %s49, %s51
      %p58 = scmp.eq.s32.totalorder %s20, 1
      %p59 = por %p57, %p58
      %p60 = scmp.ne.s32.totalorder %s51, %s52
      %p61 = scmp.eq.s32.totalorder %s20, 0
      %p62 = por %p60, %p61
      %p63 = scmp.ne.s32.totalorder %s51, %s52
      %p64 = scmp.eq.s32.totalorder %s21, 1
      %p65 = por %p63, %p64
      %p67 = scmp.ne.s32.totalorder %s52, %s66
      %p68 = scmp.eq.s32.totalorder %s21, 0
      %p69 = por %p67, %p68
      %s71 = sadd.s32 %s70, 1
      %p74 = scmp.eq.s32.totalorder %s15, 1
      %p75 = scmp.ne.s32.totalorder %s70, %s72
      %p76 = scmp.eq.s32.totalorder %s15, 0
      %p77 = por %p75, %p76
      %p78 = scmp.ne.s32.totalorder %s70, %s72
      %p79 = scmp.eq.s32.totalorder %s20, 1
      %p80 = por %p78, %p79
      %p81 = scmp.ne.s32.totalorder %s72, %s73
      %p82 = scmp.eq.s32.totalorder %s20, 0
      %p83 = por %p81, %p82
      %p84 = scmp.ne.s32.totalorder %s72, %s73
      %p85 = scmp.eq.s32.totalorder %s21, 1
      %p86 = por %p84, %p85
      %p88 = scmp.ne.s32.totalorder %s73, %s87
      %p89 = scmp.eq.s32.totalorder %s21, 0
      %p90 = por %p88, %p89
      %s91 = ssub.s32 %s15, %s22
      %p92 = scmp.eq.s32.totalorder %s91, 0
      %s94 = sadd.s32 %s93, 1
      %s95 = scalar_select %p92, %s93, %s94
      %p98 = pneg %p92
      %p99 = scmp.eq.s32.totalorder %s15, 1
      %p100 = por %p98, %p99
      %p101 = scmp.ne.s32.totalorder %s93, %s96
      %p102 = scmp.eq.s32.totalorder %s15, 0
      %p103 = por %p101, %p102
      %p104 = scmp.ne.s32.totalorder %s93, %s96
      %p105 = scmp.eq.s32.totalorder %s20, 1
      %p106 = por %p104, %p105
      %p107 = scmp.ne.s32.totalorder %s96, %s97
      %p108 = scmp.eq.s32.totalorder %s20, 0
      %p109 = por %p107, %p108
      %p110 = scmp.ne.s32.totalorder %s96, %s97
      %p111 = scmp.eq.s32.totalorder %s21, 1
      %p112 = por %p110, %p111
      %p114 = scmp.ne.s32.totalorder %s97, %s113
      %p115 = scmp.eq.s32.totalorder %s21, 0
      %p116 = por %p114, %p115
      %p117 = scmp.le.s32.totalorder 1, %s15
      %p118 = scmp.lt.s32.totalorder %s15, 3
      %p119 = pnand %p117, %p118
      %p120 = pneg %p119
      // Predicated region
      $region9: #{tpu_custom_call.1} parent=5 // pred_check
        _
      $region10: #{tpu_custom_call.1} parent=5 // pred_check_branch
        %122 = sbr.rel (%p119) target = $region12
      $region11: #{tpu_custom_call.1} parent=5 // pred_region
        %s123 = ssub.s32 %s15, 1
        // Predicated region
        $region13: #{tpu_custom_call.1} parent=11 // pred_check
          %p124 = pneg %p62
        $region14: #{tpu_custom_call.1} parent=11 // pred_check_branch
          %126 = sbr.rel (%p124) target = $region16
        $region15: #{tpu_custom_call.1} parent=11 // pred_region
          _
        $region16: #{tpu_custom_call.1} parent=11 // pred_fallthru
          _
        // Predicated region
        $region17: #{tpu_custom_call.1} parent=11 // pred_check
          %p127 = pneg %p83
        $region18: #{tpu_custom_call.1} parent=11 // pred_check_branch
          %129 = sbr.rel (%p127) target = $region20
        $region19: #{tpu_custom_call.1} parent=11 // pred_region
          _
        $region20: #{tpu_custom_call.1} parent=11 // pred_fallthru
          _
      $region12: #{tpu_custom_call.1} parent=5 // pred_fallthru
        _
      %p130 = scmp.lt.s32.totalorder %s15, 2
      // Predicated region
      $region21: #{tpu_custom_call.1} parent=5 // pred_check
        %p131 = pneg %p130
      $region22: #{tpu_custom_call.1} parent=5 // pred_check_branch
        %133 = sbr.rel (%p131) target = $region24
      $region23: #{tpu_custom_call.1} parent=5 // pred_region
        // Predicated region
        $region25: #{tpu_custom_call.1} parent=23 // pred_check
          %p134 = pneg %p35
        $region26: #{tpu_custom_call.1} parent=23 // pred_check_branch
          %136 = sbr.rel (%p134) target = $region28
        $region27: #{tpu_custom_call.1} parent=23 // pred_region
          %s137 = sand.u32 %s25, 1
          %s138 = scalar_lea.sflag [#allocation3], %s137
          %s139 = sand.u32 %s25, 1
          %s140 = smul.addr %s139, 16
          %s141 = scalar_lea.vmem [#allocation2], %s140
          %s143 = ssub.s32 256, 256
          %144 = vsyncadd %s138, %s143
          %s145 = smul.addr %s15, 2
          %s146 = smul.addr %s145, 128
          %s147 = scalar_lea.hbm %s0, %s146
          %s149 = sshll.u32 %s141, 4
          %s150 = int_to_ptr.vmem [resolvable:$true] %s149
          %152 = dma.hbm_to_vmem [thread:$0]  %s147, 256, %s150, %s138
        $region28: #{tpu_custom_call.1} parent=23 // pred_fallthru
          _
      $region24: #{tpu_custom_call.1} parent=5 // pred_fallthru
        _
      %p153 = scmp.le.s32.totalorder 1, %s15
      %p154 = scmp.lt.s32.totalorder %s15, 3
      %p155 = pnand %p153, %p154
      %p156 = pneg %p155
      // Predicated region
      $region29: #{tpu_custom_call.1} parent=5 // pred_check
        _
      $region30: #{tpu_custom_call.1} parent=5 // pred_check_branch
        %158 = sbr.rel (%p155) target = $region32
      $region31: #{tpu_custom_call.1} parent=5 // pred_region
        %s159 = ssub.s32 %s15, 1
        %s160 = sand.u32 %s28, 1
        %s161 = scalar_lea.sflag [#allocation3], %s160
        %s162 = sand.u32 %s28, 1
        %s163 = smul.addr %s162, 16
        %s164 = scalar_lea.vmem [#allocation2], %s163
        // Predicated region
        $region33: #{tpu_custom_call.1} parent=31 // pred_check
          %p165 = pneg %p41
        $region34: #{tpu_custom_call.1} parent=31 // pred_check_branch
          %167 = sbr.rel (%p165) target = $region36
        $region35: #{tpu_custom_call.1} parent=31 // pred_region
          %168 = dma.done %s161, 256
        $region36: #{tpu_custom_call.1} parent=31 // pred_fallthru
          _
        %s169 = sand.u32 %s28, 1
        %s170 = scalar_lea.sflag [#allocation3], %s169
        %s171 = sand.u32 %s28, 1
        %s172 = smul.addr %s171, 16
        %s173 = scalar_lea.vmem [#allocation2], %s172
        %p174 = pneg %p41
        %p175 = pneg %p38
        %p176 = pneg %p62
        %p177 = pneg %p59
        %p178 = pneg %p83
        %p179 = pneg %p80
        %p180 = pneg %p109
        %p181 = pneg %p106
        %s182 = sand.u32 %s96, 1
        %s183 = scalar_lea.sflag [#allocation4], %s182
        %s184 = sand.u32 %s96, 1
        %s185 = smul.addr %s184, 16
        %s186 = scalar_lea.vmem [#allocation5], %s185
        %v187 = vld [vmem:[%s164] sm:$0xff]
        %v188 = vld [vmem:[%s164 + $0x8] sm:$0xff]
        %v189 = vadd.f32 %v187, %v188
        %190 = vadd.xlane.f32.xlu0 %v189
        %v191 = vpop.xlane.xlu0 %190
        %v192 = vmul.f32 %v191, 0.00390625
        %v193 = vmax.f32 %v187, %v188
        %194 = vmax.xlane.f32.xlu0 %v193
        %v195 = vpop.xlane.xlu0 %194
        %vm196 = vcmask 7168
        %v197 = vsel %vm196, %v192, %v195
        %v198 = vld [vmem:[%s1] sm:$0x3]
        %v199 = vld [vmem:[%s2] sm:$0xff]
        %vm200 = vcmask 64512
        %v202 = vsel %vm200, %v198, 0
        %204 = vmatprep.subr.mxu0 0.0
        %205 = vmatpush1.msra.mxu0 %v197
        %206 = vmatprep.subr.mxu0 0.0
        %207 = vmatpush1.msra.mxu0 0.0
        %208 = vmatprep.subr.mxu0 0.0
        %209 = vmatpush1.msra.mxu0 0.0
        %210 = vmatprep.subr.mxu0 0.0
        %211 = vmatpush1.msra.mxu0 0.0
        %212 = vmatprep.subr.mxu0 0.0
        %213 = vmatpush1.msra.mxu0 0.0
        %214 = vmatprep.subr.mxu0 0.0
        %215 = vmatpush1.msra.mxu0 0.0
        %216 = vmatprep.subr.mxu0 0.0
        %217 = vmatpush1.msra.mxu0 0.0
        %218 = vmatprep.subr.mxu0 0.0
        %219 = vmatpush1.msra.mxu0 0.0
        %220 = vmatprep.subr.mxu0 0.0
        %221 = vmatpush1.msra.mxu0 0.0
        %222 = vmatprep.subr.mxu0 0.0
        %223 = vmatpush1.msra.mxu0 0.0
        %224 = vmatprep.subr.mxu0 0.0
        %225 = vmatpush1.msra.mxu0 0.0
        %226 = vmatprep.subr.mxu0 0.0
        %227 = vmatpush1.msra.mxu0 0.0
        %228 = vmatprep.subr.mxu0 0.0
        %229 = vmatpush1.msra.mxu0 0.0
        %230 = vmatprep.subr.mxu0 0.0
        %231 = vmatpush1.msra.mxu0 0.0
        %232 = vmatprep.subr.mxu0 0.0
        %233 = vmatpush1.msra.mxu0 0.0
        %234 = vmatprep.subr.mxu0 0.0
        %235 = vmatpush1.msra.mxu0 0.0
        %236 = vmatprep.subr.mxu0 0.0
        %237 = vmatpush1.msra.mxu0 0.0
        %238 = vmatprep.subr.mxu0 0.0
        %239 = vmatpush1.msra.mxu0 0.0
        %240 = vmatprep.subr.mxu0 0.0
        %241 = vmatpush1.msra.mxu0 0.0
        %242 = vmatprep.subr.mxu0 0.0
        %243 = vmatpush1.msra.mxu0 0.0
        %244 = vmatprep.subr.mxu0 0.0
        %245 = vmatpush1.msra.mxu0 0.0
        %246 = vmatprep.subr.mxu0 0.0
        %247 = vmatpush1.msra.mxu0 0.0
        %248 = vmatprep.subr.mxu0 0.0
        %249 = vmatpush1.msra.mxu0 0.0
        %250 = vmatprep.subr.mxu0 0.0
        %251 = vmatpush1.msra.mxu0 0.0
        %252 = vmatprep.subr.mxu0 0.0
        %253 = vmatpush1.msra.mxu0 0.0
        %254 = vmatprep.subr.mxu0 0.0
        %255 = vmatpush1.msra.mxu0 0.0
        %256 = vmatprep.subr.mxu0 0.0
        %257 = vmatpush1.msra.mxu0 0.0
        %258 = vmatprep.subr.mxu0 0.0
        %259 = vmatpush1.msra.mxu0 0.0
        %260 = vmatprep.subr.mxu0 0.0
        %261 = vmatpush1.msra.mxu0 0.0
        %262 = vmatprep.subr.mxu0 0.0
        %263 = vmatpush1.msra.mxu0 0.0
        %264 = vmatprep.subr.mxu0 0.0
        %265 = vmatpush1.msra.mxu0 0.0
        %266 = vmatprep.subr.mxu0 0.0
        %267 = vmatpush1.msra.mxu0 0.0
        %268 = vmatprep.mubr.f32.mxu0 0.0
        %269 = vmatmul.mubr.f32.gmra.mrb[0].mxu0 %v202
        %v270 = vpop.f32.mrb[0].mxu0
        %v271 = vadd.f32 0.0, %v270
        %v272 = vpop.f32.mrb[0].mxu0
        %273 = vdwg.mxu0
        %v274 = vmax.f32 %v271, 0.0
        %vm275 = vcmask 15360
        %v277 = vsel %vm275, %v199, 0
        %vm279 = vcmask 1041408
        %v281 = vsel %vm279, %v274, 0
        %283 = vmatprep.subr.mxu0 0.0
        %284 = vmatpush1.msra.mxu0 %v281
        %285 = vmatprep.subr.mxu0 0.0
        %286 = vmatpush1.msra.mxu0 0.0
        %287 = vmatprep.subr.mxu0 0.0
        %288 = vmatpush1.msra.mxu0 0.0
        %289 = vmatprep.subr.mxu0 0.0
        %290 = vmatpush1.msra.mxu0 0.0
        %291 = vmatprep.subr.mxu0 0.0
        %292 = vmatpush1.msra.mxu0 0.0
        %293 = vmatprep.subr.mxu0 0.0
        %294 = vmatpush1.msra.mxu0 0.0
        %295 = vmatprep.subr.mxu0 0.0
        %296 = vmatpush1.msra.mxu0 0.0
        %297 = vmatprep.subr.mxu0 0.0
        %298 = vmatpush1.msra.mxu0 0.0
        %299 = vmatprep.subr.mxu0 0.0
        %300 = vmatpush1.msra.mxu0 0.0
        %301 = vmatprep.subr.mxu0 0.0
        %302 = vmatpush1.msra.mxu0 0.0
        %303 = vmatprep.subr.mxu0 0.0
        %304 = vmatpush1.msra.mxu0 0.0
        %305 = vmatprep.subr.mxu0 0.0
        %306 = vmatpush1.msra.mxu0 0.0
        %307 = vmatprep.subr.mxu0 0.0
        %308 = vmatpush1.msra.mxu0 0.0
        %309 = vmatprep.subr.mxu0 0.0
        %310 = vmatpush1.msra.mxu0 0.0
        %311 = vmatprep.subr.mxu0 0.0
        %312 = vmatpush1.msra.mxu0 0.0
        %313 = vmatprep.subr.mxu0 0.0
        %314 = vmatpush1.msra.mxu0 0.0
        %315 = vmatprep.subr.mxu0 0.0
        %316 = vmatpush1.msra.mxu0 0.0
        %317 = vmatprep.subr.mxu0 0.0
        %318 = vmatpush1.msra.mxu0 0.0
        %319 = vmatprep.subr.mxu0 0.0
        %320 = vmatpush1.msra.mxu0 0.0
        %321 = vmatprep.subr.mxu0 0.0
        %322 = vmatpush1.msra.mxu0 0.0
        %323 = vmatprep.subr.mxu0 0.0
        %324 = vmatpush1.msra.mxu0 0.0
        %325 = vmatprep.subr.mxu0 0.0
        %326 = vmatpush1.msra.mxu0 0.0
        %327 = vmatprep.subr.mxu0 0.0
        %328 = vmatpush1.msra.mxu0 0.0
        %329 = vmatprep.subr.mxu0 0.0
        %330 = vmatpush1.msra.mxu0 0.0
        %331 = vmatprep.subr.mxu0 0.0
        %332 = vmatpush1.msra.mxu0 0.0
        %333 = vmatprep.subr.mxu0 0.0
        %334 = vmatpush1.msra.mxu0 0.0
        %335 = vmatprep.subr.mxu0 0.0
        %336 = vmatpush1.msra.mxu0 0.0
        %337 = vmatprep.subr.mxu0 0.0
        %338 = vmatpush1.msra.mxu0 0.0
        %339 = vmatprep.subr.mxu0 0.0
        %340 = vmatpush1.msra.mxu0 0.0
        %341 = vmatprep.subr.mxu0 0.0
        %342 = vmatpush1.msra.mxu0 0.0
        %343 = vmatprep.subr.mxu0 0.0
        %344 = vmatpush1.msra.mxu0 0.0
        %345 = vmatprep.subr.mxu0 0.0
        %346 = vmatpush1.msra.mxu0 0.0
        %347 = vmatprep.mubr.f32.mxu0 0.0
        %348 = vmatmul.mubr.f32.gmra.mrb[0].mxu0 %v277
        %v349 = vpop.f32.mrb[0].mxu0
        %v350 = vadd.f32 0.0, %v349
        %v351 = vpop.f32.mrb[0].mxu0
        %352 = vdwg.mxu0
        %354 = vrot.lane.b32.xlu0 %v350, 127
        %v355 = vpop.permute.xlu0 %354
        %v357 = vadd.f32 %v350, %v355
        %v358 = vxor.u32 %v357, 2147483648
        %v359 = vmul.f32 %v358, 1.442695
        %v360 = vpow.pop %v359
        %v361 = vadd.f32 %v360, 1.0
        %v362 = vrcp.pop %v361
        %v363 = vmul.f32 1.0, %v362
        %365 = vset.pattern.permute.xlu0 0
        %366 = vperm.xlu0 %365, %v363
        %v367 = vpop.permute.xlu0 %366
        %v369 = vmul.f32 %v187, %v367
        %v370 = vmul.f32 %v188, %v367
        %371 = vst [vmem:[%s186] sm:$0xff] %v369
        %372 = vst [vmem:[%s186 + $0x8] sm:$0xff] %v370
        %s373 = sand.u32 %s96, 1
        %s374 = scalar_lea.sflag [#allocation4], %s373
        %s375 = sand.u32 %s96, 1
        %s376 = smul.addr %s375, 16
        %s377 = scalar_lea.vmem [#allocation5], %s376
        // Predicated region
        $region37: #{tpu_custom_call.1} parent=31 // pred_check
          %p378 = pneg %p106
        $region38: #{tpu_custom_call.1} parent=31 // pred_check_branch
          %380 = sbr.rel (%p378) target = $region40
        $region39: #{tpu_custom_call.1} parent=31 // pred_region
          %s382 = ssub.s32 256, 256
          %383 = vsyncadd %s374, %s382
          %s384 = smul.addr %s20, 2
          %s385 = smul.addr %s384, 128
          %s386 = scalar_lea.hbm %s3, %s385
          %s388 = sshll.u32 %s377, 4
          %s389 = int_to_ptr.vmem [resolvable:$true] %s388
          %391 = dma.vmem_to_hbm [thread:$0]  %s389, 256, %s386, %s374
        $region40: #{tpu_custom_call.1} parent=31 // pred_fallthru
          _
      $region32: #{tpu_custom_call.1} parent=5 // pred_fallthru
        _
      %p392 = scmp.le.s32.totalorder 2, %s15
      // Predicated region
      $region41: #{tpu_custom_call.1} parent=5 // pred_check
        %p393 = pneg %p392
      $region42: #{tpu_custom_call.1} parent=5 // pred_check_branch
        %395 = sbr.rel (%p393) target = $region44
      $region43: #{tpu_custom_call.1} parent=5 // pred_region
        %s396 = ssub.s32 %s15, 2
        // Predicated region
        $region45: #{tpu_custom_call.1} parent=43 // pred_check
          %p397 = pneg %p112
        $region46: #{tpu_custom_call.1} parent=43 // pred_check_branch
          %399 = sbr.rel (%p397) target = $region48
        $region47: #{tpu_custom_call.1} parent=43 // pred_region
          %s400 = sand.u32 %s97, 1
          %s401 = scalar_lea.sflag [#allocation4], %s400
          %s402 = sand.u32 %s97, 1
          %s403 = smul.addr %s402, 16
          %s404 = scalar_lea.vmem [#allocation5], %s403
          %405 = dma.done %s401, 256
        $region48: #{tpu_custom_call.1} parent=43 // pred_fallthru
          _
      $region44: #{tpu_custom_call.1} parent=5 // pred_fallthru
        _
    $region6: #{tpu_custom_call.1} parent=1 // loop_footer
      %s19 = sadd.s32 1, %s15
    $region7: #{tpu_custom_call.1} parent=1 // loop_footer_branch
      %14 = sbr.rel target = $region3
    $region8: #{tpu_custom_call.1} parent=1 // loop_exit
      _
    %406 = vsyncpa [#allocation3], 1
    %s407 = scalar_lea.sflag [#allocation3], 1
    %408 = vsyncpa %s407, 1
    %409 = vsyncpa [#allocation4], 1
    %s410 = scalar_lea.sflag [#allocation4], 1
    %411 = vsyncpa %s410, 1

</llo_original>
